<compile_context>
chip_gen: v5e
topology: v5e:2x2
jax: 0.10.0
libtpu: 0.0.40
codegen_flags: <defaults>
</compile_context>

<pallas_src>
import functools

import jax
import jax.numpy as jnp
import numpy as np
from jax.experimental import pallas as pl
from jax.experimental.pallas import tpu as pltpu


# ----------------------------------------------------------------------------
# Kernel
# ----------------------------------------------------------------------------
def _mhmp_kernel(x_ref, a_ref, start_ref, end_ref, uni_ref, coef_ref, w_ref,
                 out_ref, *, eps, k, n_head, h, compute_dtype):
    """One grid step = B_tile examples, everything resident in VMEM.

    x_ref:     (B, n_node, h)                 f32
    a_ref:     (B*n_head, n_node, n_node)     compute_dtype (bf16)
    start_ref: (B, n_node, 1)                 f32
    end_ref:   (B, n_node, 1)                 f32
    uni_ref:   (B, n_head, 1, 1)              f32
    coef_ref:  (B, n_head*n_head, 1, 1)       f32, coef[b, p*nh+q] = trans[b,p,q]*uni[b,q]
    w_ref:     (k, n_head, H, H)              compute_dtype, augmented per-head weights
    out_ref:   (B, n_node, h)
    """
    B = x_ref.shape[0]
    n_node = x_ref.shape[1]
    H = h + 1
    NB = B * n_head

    x = x_ref[...]
    start = start_ref[...]
    end = end_ref[...]
    a = a_ref[...]
    uni = uni_ref[...]
    coef = coef_ref[...]
    w = w_ref[...]

    # hop input shared by all heads: [X*start | start]  -> (B, n, H)
    s0 = jnp.concatenate([x * start, start], axis=-1)

    heads = None  # (B, n_head, n_node, H) f32 after each hop: head q = [Z_q | D_q]
    for t in range(k):
        sw_parts = []
        for q in range(n_head):
            if t == 0:
                # per new head q: uni[b,q] * [X*start | start]
                pre_q = s0 * uni[:, q]                               # (B, n, H)
            else:
                # head mixing with uni folded in: sum_p coef[b,p,q] * heads[b,p]
                pre_q = heads[:, 0] * coef[:, 0 * n_head + q]
                for p in range(1, n_head):
                    pre_q = pre_q + heads[:, p] * coef[:, p * n_head + q]
            # one (B*n_node, H) x (H, H) GEMM per head: M = B_tile*n_node rows
            hq = pre_q.reshape(B * n_node, H).astype(compute_dtype)
            swq = jnp.dot(hq, w[t, q], preferred_element_type=jnp.float32)
            sw_parts.append(swq.reshape(B, 1, n_node, H))

        sw = jnp.concatenate(sw_parts, axis=1)                       # (B, nh, n, H)
        sw = sw.reshape(NB, n_node, H).astype(compute_dtype)

        # graph propagation: batched over (example, head): A[b,p] @ [Z_p | D_p]
        heads = jax.lax.dot_general(
            a, sw,
            dimension_numbers=(((2,), (1,)), ((0,), (0,))),
            preferred_element_type=jnp.float32,
        ).reshape(B, n_head, n_node, H)

    # finalize: sum heads, apply end gates, fused approx-reciprocal divide
    hsum = heads[:, 0]
    for p in range(1, n_head):
        hsum = hsum + heads[:, p]                                    # (B, n, H)
    z = hsum[:, :, :h]
    d = hsum[:, :, h:]
    inv = pl.reciprocal(d * end + eps, approx=True)
    out_ref[...] = ((z * end) * inv).astype(out_ref.dtype)


# ----------------------------------------------------------------------------
# Parameter setup (one-time, not per-forward)
# ----------------------------------------------------------------------------
def prepare_weights(w_vs, n_head, dtype=jnp.bfloat16):
    """w_vs (k, h, h*n_head) -> augmented per-head weights (k, n_head, H, H),
    head p block = [[W_p, 0], [0, 1]], H = h + 1.  The extra row/column carries
    the denominator D through the same GEMM as the numerator Z."""
    k, h, hn = w_vs.shape
    assert hn == h * n_head
    H = h + 1
    # w_vs[t, h_in, h_out*n_head + p]  ->  (k, p, h_in, h_out)
    w_re = jnp.transpose(w_vs.reshape(k, h, h, n_head), (0, 3, 1, 2))
    w_aug = jnp.zeros((k, n_head, H, H), dtype=jnp.float32)
    w_aug = w_aug.at[:, :, :h, :h].set(w_re)
    w_aug = w_aug.at[:, :, h, h].set(1.0)
    return w_aug.astype(dtype)


# ----------------------------------------------------------------------------
# Tiling policy (generation aware)
# ----------------------------------------------------------------------------
def _pad_tile_bytes(rows, cols, itemsize):
    """Padded VMEM footprint of a (rows, cols) trailing tile."""
    sub = 8 * (4 // itemsize)          # f32: 8, bf16: 16
    r = -(-rows // sub) * sub
    c = -(-cols // 128) * 128
    return r * c * itemsize


def _vmem_need_bytes(bt, n_node, h, n_head, k, a_item, w_item):
    H = h + 1
    blocks = (
        bt * _pad_tile_bytes(n_node, h, 4)                              # X
        + bt * n_head * _pad_tile_bytes(n_node, n_node, a_item)         # A
        + 2 * bt * _pad_tile_bytes(n_node, 1, 4)                        # start/end
        + bt * n_head * _pad_tile_bytes(1, 1, 4)                        # uni
        + bt * n_head * n_head * _pad_tile_bytes(1, 1, 4)               # coef
        + k * n_head * _pad_tile_bytes(H, H, w_item)                    # weights
        + bt * _pad_tile_bytes(n_node, h, 4)                            # out
    )
    inter = 8 * bt * n_head * _pad_tile_bytes(n_node, H, 4)             # temporaries
    return 2 * blocks + inter + (2 << 20)                               # 2x = dbl buffer


def _chip_caps():
    """(num_tensorcores, safe vmem limit cap, target GEMM M rows)."""
    kind = ""
    try:
        kind = jax.devices()[0].device_kind.lower()
    except Exception:
        pass
    is_v7 = ("v7" in kind) or ("7x" in kind)
    n_tc = 2 if is_v7 else 1
    try:
        phys = int(pltpu.get_tpu_info().vmem_capacity_bytes)
    except Exception:
        phys = (64 << 20) if is_v7 else (128 << 20)
    cap = min(int(phys * 3 // 4), 100 << 20)        # ~48 MiB on v7x, ~96 MiB v5e/v6e
    target_rows = 128 if "v5" in kind else 256      # MXU rows: 4x128^2 vs 2x256^2
    return n_tc, cap, target_rows


def _choose_b_tile(bs, n_node, h, n_head, k, a_item, w_item,
                   vmem_cap, min_steps, target_rows):
    """Largest useful divisor of bs: smallest tile reaching M>=target_rows that
    fits the VMEM cap, else the largest that fits.  '>=2 grid steps' is only
    enforced when min_steps=2 (v7x, 2 TensorCores)."""
    divs = [d for d in range(1, bs + 1) if bs % d == 0]
    cands = [d for d in divs if bs // d >= min_steps] or divs
    fit = [d for d in cands
           if _vmem_need_bytes(d, n_node, h, n_head, k, a_item, w_item) <= vmem_cap]
    if not fit:
        return 1
    reach = [d for d in fit if d * n_node >= target_rows]
    return min(reach) if reach else max(fit)


# ----------------------------------------------------------------------------
# Wrapper
# ----------------------------------------------------------------------------
def multihop_message_passing(X, A, start_attn, end_attn, uni_attn, trans_attn,
                             w_aug, *, eps=1e-20, b_tile=None,
                             compute_dtype=jnp.bfloat16):
    """Forward of MultiHopMessagePassingLayerDeprecated
       (ablation=[], diag_decompose=False, n_basis=0).
       `w_aug` must come from prepare_weights(w_vs, n_head, compute_dtype)."""
    bs, n_node, h = X.shape
    n_head = A.shape[1]
    H = h + 1
    k = w_aug.shape[0]
    assert w_aug.shape == (k, n_head, H, H)
    assert k >= 1

    a_item = jnp.dtype(compute_dtype).itemsize
    n_tc, vmem_cap, target_rows = _chip_caps()
    if b_tile is None:
        b_tile = _choose_b_tile(bs, n_node, h, n_head, k, a_item, a_item,
                                vmem_cap, min_steps=n_tc,
                                target_rows=target_rows)
    assert bs % b_tile == 0
    steps = bs // b_tile

    # Input relayouts (tiny, except the bf16 cast of A which also halves its
    # HBM footprint / DMA volume).
    A_flat = A.astype(compute_dtype).reshape(bs * n_head, n_node, n_node)
    start3 = start_attn.reshape(bs, n_node, 1).astype(jnp.float32)
    end3 = end_attn.reshape(bs, n_node, 1).astype(jnp.float32)
    uni4 = uni_attn.reshape(bs, n_head, 1, 1).astype(jnp.float32)
    # coef[b, p, q] = trans[b, p, q] * uni[b, q]
    coef4 = (trans_attn * uni_attn[:, None, :]).reshape(
        bs, n_head * n_head, 1, 1).astype(jnp.float32)
    w_aug = w_aug.astype(compute_dtype)

    kernel = functools.partial(_mhmp_kernel, eps=eps, k=k, n_head=n_head, h=h,
                               compute_dtype=compute_dtype)

    need = _vmem_need_bytes(b_tile, n_node, h, n_head, k, a_item, a_item)
    vmem_limit = int(min(vmem_cap, max(2 * need, 32 << 20)))

    return pl.pallas_call(
        kernel,
        out_shape=jax.ShapeDtypeStruct((bs, n_node, h), X.dtype),
        grid_spec=pltpu.PrefetchScalarGridSpec(
            num_scalar_prefetch=0,
            grid=(steps,),
            in_specs=[
                pl.BlockSpec((b_tile, n_node, h), lambda i: (i, 0, 0)),
                pl.BlockSpec((b_tile * n_head, n_node, n_node),
                             lambda i: (i, 0, 0)),
                pl.BlockSpec((b_tile, n_node, 1), lambda i: (i, 0, 0)),
                pl.BlockSpec((b_tile, n_node, 1), lambda i: (i, 0, 0)),
                pl.BlockSpec((b_tile, n_head, 1, 1), lambda i: (i, 0, 0, 0)),
                pl.BlockSpec((b_tile, n_head * n_head, 1, 1),
                             lambda i: (i, 0, 0, 0)),
                pl.BlockSpec((k, n_head, H, H), lambda i: (0, 0, 0, 0)),
            ],
            out_specs=pl.BlockSpec((b_tile, n_node, h), lambda i: (i, 0, 0)),
        ),
        compiler_params=pltpu.CompilerParams(
            dimension_semantics=("parallel",),
            vmem_limit_bytes=vmem_limit),
    )(X, A_flat, start3, end3, uni4, coef4, w_aug)


# ----------------------------------------------------------------------------
# Pure-JAX reference (transcription of the PyTorch forward, no-ablation branch)
# ----------------------------------------------------------------------------
def reference_forward(X, A, start_attn, end_attn, uni_attn, trans_attn, w_vs,
                      *, eps=1e-20):
    P = jax.lax.Precision.HIGHEST
    bs, n_node, h = X.shape
    n_head = A.shape[1]
    k = w_vs.shape[0]
    W = w_vs
    A_ = A.reshape(bs * n_head, n_node, n_node)
    uni = uni_attn.reshape(bs * n_head)

    Z = X * start_attn[:, :, None]
    for t in range(k):
        if t == 0:
            Z = jnp.matmul(Z, W[t], precision=P).reshape(bs, n_node, h, n_head)
        else:
            Z = jnp.matmul(Z, W[t], precision=P).reshape(
                bs, n_head, n_node, h, n_head)
            Z = Z * trans_attn[:, :, None, None, :]
            Z = Z.sum(1)
        Z = jnp.transpose(Z, (0, 3, 1, 2)).reshape(bs * n_head, n_node, h)
        Z = Z * uni[:, None, None]
        Z = jnp.matmul(A_, Z, precision=P)
        Z = Z.reshape(bs, n_head, n_node, h)
    Z = Z.sum(1)
    Z = Z * end_attn[:, :, None]

    D = start_attn
    for t in range(k):
        if t == 0:
            D = jnp.broadcast_to(D[:, None, :], (bs, n_head, n_node))
        else:
            D = (D[:, :, None, :] * trans_attn[:, :, :, None]).sum(1)
        D = D.reshape(bs * n_head, n_node, 1)
        D = D * uni[:, None, None]
        D = jnp.matmul(A_, D, precision=P)
        D = D.reshape(bs, n_head, n_node)
    D = D.sum(1)
    D = D * end_attn
    return Z / (D[:, :, None] + eps)


if __name__ == "__main__":
    # module config (diag_decompose=False, n_basis=0, ablation=[])
    k, n_head, hidden_size = 2, 2, 32
    bs, n_node = 2, 16
    eps = 1e-20

    key = jax.random.PRNGKey(0)
    kx, ka, ks, ke, ku, kt, kw = jax.random.split(key, 7)

    X = jax.random.normal(kx, (bs, n_node, hidden_size), dtype=jnp.float32)
    # attention-like (positive) weights so the D denominator is well away from 0
    A = jax.random.uniform(ka, (bs, n_head, n_node, n_node), dtype=jnp.float32)
    start_attn = jax.random.uniform(ks, (bs, n_node), dtype=jnp.float32)
    end_attn = jax.random.uniform(ke, (bs, n_node), dtype=jnp.float32)
    uni_attn = jax.random.uniform(ku, (bs, n_head), dtype=jnp.float32)
    trans_attn = jax.random.uniform(kt, (bs, n_head, n_head), dtype=jnp.float32)
    w_vs = jax.random.normal(kw, (k, hidden_size, hidden_size * n_head),
                             dtype=jnp.float32)

    # one-time parameter re-layout (hoisted out of the per-forward path)
    w_aug = jax.block_until_ready(prepare_weights(w_vs, n_head, jnp.bfloat16))

    out = multihop_message_passing(X, A, start_attn, end_attn, uni_attn,
                                   trans_attn, w_aug, eps=eps)
    out = jax.block_until_ready(out)

    ref = reference_forward(X, A, start_attn, end_attn, uni_attn, trans_attn,
                            w_vs, eps=eps)
    ref = jax.block_until_ready(ref)

    assert out.shape == (bs, n_node, hidden_size)
    # Tolerance reflects bf16 MXU operands (f32 accumulation) vs the
    # Precision.HIGHEST f32 reference.
    assert np.allclose(np.asarray(out), np.asarray(ref), rtol=3e-2, atol=5e-2), (
        "mismatch vs reference")

    print("KERNEL_OK")
</pallas_src>

<mosaic_0001>
module attributes {stable_mosaic.version = 11 : i64} {
  func.func @_mhmp_kernel(%arg0: i32, %arg1: memref<2x16x32xf32, #tpu.memory_space<vmem>>, %arg2: memref<4x16x16xbf16, #tpu.memory_space<vmem>>, %arg3: memref<2x16x1xf32, #tpu.memory_space<vmem>>, %arg4: memref<2x16x1xf32, #tpu.memory_space<vmem>>, %arg5: memref<2x2x1x1xf32, #tpu.memory_space<vmem>>, %arg6: memref<2x4x1x1xf32, #tpu.memory_space<vmem>>, %arg7: memref<2x2x33x33xbf16, #tpu.memory_space<vmem>>, %arg8: memref<2x16x32xf32, #tpu.memory_space<vmem>>) attributes {dimension_semantics = [#tpu.dimension_semantics<parallel>], iteration_bounds = array<i64: 1>, scalar_prefetch = 0 : i64, scratch_operands = 0 : i64, tpu.core_type = #tpu.core_type<tc>, window_params = [{transform_indices = @transform_0, window_bounds = array<i64: 2, 16, 32>}, {transform_indices = @transform_1, window_bounds = array<i64: 4, 16, 16>}, {transform_indices = @transform_2, window_bounds = array<i64: 2, 16, 1>}, {transform_indices = @transform_3, window_bounds = array<i64: 2, 16, 1>}, {transform_indices = @transform_4, window_bounds = array<i64: 2, 2, 1, 1>}, {transform_indices = @transform_5, window_bounds = array<i64: 2, 4, 1, 1>}, {pipeline_mode = #tpu.pipeline_mode<synchronous>, transform_indices = @transform_6, window_bounds = array<i64: 2, 2, 33, 33>}, {transform_indices = @transform_7, window_bounds = array<i64: 2, 16, 32>}]} {
    %c0 = arith.constant 0 : index
    %c0_0 = arith.constant 0 : index
    %c0_1 = arith.constant 0 : index
    %0 = vector.load %arg1[%c0, %c0_0, %c0_1] : memref<2x16x32xf32, #tpu.memory_space<vmem>>, vector<2x16x32xf32>
    %c0_2 = arith.constant 0 : index
    %c0_3 = arith.constant 0 : index
    %c0_4 = arith.constant 0 : index
    %1 = vector.load %arg3[%c0_2, %c0_3, %c0_4] : memref<2x16x1xf32, #tpu.memory_space<vmem>>, vector<2x16x1xf32>
    %c0_5 = arith.constant 0 : index
    %c0_6 = arith.constant 0 : index
    %c0_7 = arith.constant 0 : index
    %2 = vector.load %arg4[%c0_5, %c0_6, %c0_7] : memref<2x16x1xf32, #tpu.memory_space<vmem>>, vector<2x16x1xf32>
    %c0_8 = arith.constant 0 : index
    %c0_9 = arith.constant 0 : index
    %c0_10 = arith.constant 0 : index
    %3 = vector.load %arg2[%c0_8, %c0_9, %c0_10] : memref<4x16x16xbf16, #tpu.memory_space<vmem>>, vector<4x16x16xbf16>
    %c0_11 = arith.constant 0 : index
    %c0_12 = arith.constant 0 : index
    %c0_13 = arith.constant 0 : index
    %c0_14 = arith.constant 0 : index
    %4 = vector.load %arg5[%c0_11, %c0_12, %c0_13, %c0_14] : memref<2x2x1x1xf32, #tpu.memory_space<vmem>>, vector<2x2x1x1xf32>
    %c0_15 = arith.constant 0 : index
    %c0_16 = arith.constant 0 : index
    %c0_17 = arith.constant 0 : index
    %c0_18 = arith.constant 0 : index
    %5 = vector.load %arg6[%c0_15, %c0_16, %c0_17, %c0_18] : memref<2x4x1x1xf32, #tpu.memory_space<vmem>>, vector<2x4x1x1xf32>
    %c0_19 = arith.constant 0 : index
    %c0_20 = arith.constant 0 : index
    %c0_21 = arith.constant 0 : index
    %c0_22 = arith.constant 0 : index
    %6 = vector.load %arg7[%c0_19, %c0_20, %c0_21, %c0_22] : memref<2x2x33x33xbf16, #tpu.memory_space<vmem>>, vector<2x2x33x33xbf16>
    %7 = vector.broadcast %1 : vector<2x16x1xf32> to vector<2x16x32xf32>
    %8 = arith.mulf %0, %7 : vector<2x16x32xf32>
    %9 = tpu.concatenate %8, %1 in 2 : vector<2x16x32xf32>, vector<2x16x1xf32> -> vector<2x16x33xf32>
    %10 = vector.extract_strided_slice %4 {offsets = [0, 0, 0, 0], sizes = [2, 1, 1, 1], strides = [1, 1, 1, 1]} : vector<2x2x1x1xf32> to vector<2x1x1x1xf32>
    %11 = vector.shape_cast %10 : vector<2x1x1x1xf32> to vector<2x1x1xf32>
    %12 = vector.broadcast %11 : vector<2x1x1xf32> to vector<2x16x33xf32>
    %13 = arith.mulf %9, %12 : vector<2x16x33xf32>
    %14 = vector.shape_cast %13 : vector<2x16x33xf32> to vector<32x33xf32>
    %15 = arith.truncf %14 : vector<32x33xf32> to vector<32x33xbf16>
    %16 = vector.extract_strided_slice %6 {offsets = [0, 0, 0, 0], sizes = [1, 1, 33, 33], strides = [1, 1, 1, 1]} : vector<2x2x33x33xbf16> to vector<1x1x33x33xbf16>
    %17 = vector.shape_cast %16 : vector<1x1x33x33xbf16> to vector<33x33xbf16>
    %cst = arith.constant dense<0.000000e+00> : vector<32x33xf32>
    %18 = tpu.matmul %15, %17, %cst {dimension_numbers = #tpu.dot_dimension_numbers<[1], [0], [0], [1], [0, 0, 1, 1], [], []>} : vector<32x33xbf16>, vector<33x33xbf16>, vector<32x33xf32> -> vector<32x33xf32>
    %19 = vector.shape_cast %18 : vector<32x33xf32> to vector<2x1x16x33xf32>
    %20 = vector.extract_strided_slice %4 {offsets = [0, 1, 0, 0], sizes = [2, 1, 1, 1], strides = [1, 1, 1, 1]} : vector<2x2x1x1xf32> to vector<2x1x1x1xf32>
    %21 = vector.shape_cast %20 : vector<2x1x1x1xf32> to vector<2x1x1xf32>
    %22 = vector.broadcast %21 : vector<2x1x1xf32> to vector<2x16x33xf32>
    %23 = arith.mulf %9, %22 : vector<2x16x33xf32>
    %24 = vector.shape_cast %23 : vector<2x16x33xf32> to vector<32x33xf32>
    %25 = arith.truncf %24 : vector<32x33xf32> to vector<32x33xbf16>
    %26 = vector.extract_strided_slice %6 {offsets = [0, 1, 0, 0], sizes = [1, 1, 33, 33], strides = [1, 1, 1, 1]} : vector<2x2x33x33xbf16> to vector<1x1x33x33xbf16>
    %27 = vector.shape_cast %26 : vector<1x1x33x33xbf16> to vector<33x33xbf16>
    %cst_23 = arith.constant dense<0.000000e+00> : vector<32x33xf32>
    %28 = tpu.matmul %25, %27, %cst_23 {dimension_numbers = #tpu.dot_dimension_numbers<[1], [0], [0], [1], [0, 0, 1, 1], [], []>} : vector<32x33xbf16>, vector<33x33xbf16>, vector<32x33xf32> -> vector<32x33xf32>
    %29 = vector.shape_cast %28 : vector<32x33xf32> to vector<2x1x16x33xf32>
    %30 = tpu.concatenate %19, %29 in 1 : vector<2x1x16x33xf32>, vector<2x1x16x33xf32> -> vector<2x2x16x33xf32>
    %31 = vector.shape_cast %30 : vector<2x2x16x33xf32> to vector<4x16x33xf32>
    %32 = arith.truncf %31 : vector<4x16x33xf32> to vector<4x16x33xbf16>
    %cst_24 = arith.constant dense<0.000000e+00> : vector<4x16x33xf32>
    %33 = tpu.matmul %3, %32, %cst_24 {dimension_numbers = #tpu.dot_dimension_numbers<[2], [1], [1], [2], [0, 0, 0, 1, 1, 2], [0], [0]>} : vector<4x16x16xbf16>, vector<4x16x33xbf16>, vector<4x16x33xf32> -> vector<4x16x33xf32>
    %34 = vector.shape_cast %33 : vector<4x16x33xf32> to vector<2x2x16x33xf32>
    %35 = vector.extract_strided_slice %34 {offsets = [0, 0, 0, 0], sizes = [2, 1, 16, 33], strides = [1, 1, 1, 1]} : vector<2x2x16x33xf32> to vector<2x1x16x33xf32>
    %36 = vector.shape_cast %35 : vector<2x1x16x33xf32> to vector<2x16x33xf32>
    %37 = vector.extract_strided_slice %5 {offsets = [0, 0, 0, 0], sizes = [2, 1, 1, 1], strides = [1, 1, 1, 1]} : vector<2x4x1x1xf32> to vector<2x1x1x1xf32>
    %38 = vector.shape_cast %37 : vector<2x1x1x1xf32> to vector<2x1x1xf32>
    %39 = vector.broadcast %38 : vector<2x1x1xf32> to vector<2x16x33xf32>
    %40 = arith.mulf %36, %39 : vector<2x16x33xf32>
    %41 = vector.extract_strided_slice %34 {offsets = [0, 1, 0, 0], sizes = [2, 1, 16, 33], strides = [1, 1, 1, 1]} : vector<2x2x16x33xf32> to vector<2x1x16x33xf32>
    %42 = vector.shape_cast %41 : vector<2x1x16x33xf32> to vector<2x16x33xf32>
    %43 = vector.extract_strided_slice %5 {offsets = [0, 2, 0, 0], sizes = [2, 1, 1, 1], strides = [1, 1, 1, 1]} : vector<2x4x1x1xf32> to vector<2x1x1x1xf32>
    %44 = vector.shape_cast %43 : vector<2x1x1x1xf32> to vector<2x1x1xf32>
    %45 = vector.broadcast %44 : vector<2x1x1xf32> to vector<2x16x33xf32>
    %46 = arith.mulf %42, %45 : vector<2x16x33xf32>
    %47 = arith.addf %40, %46 : vector<2x16x33xf32>
    %48 = vector.shape_cast %47 : vector<2x16x33xf32> to vector<32x33xf32>
    %49 = arith.truncf %48 : vector<32x33xf32> to vector<32x33xbf16>
    %50 = vector.extract_strided_slice %6 {offsets = [1, 0, 0, 0], sizes = [1, 1, 33, 33], strides = [1, 1, 1, 1]} : vector<2x2x33x33xbf16> to vector<1x1x33x33xbf16>
    %51 = vector.shape_cast %50 : vector<1x1x33x33xbf16> to vector<33x33xbf16>
    %cst_25 = arith.constant dense<0.000000e+00> : vector<32x33xf32>
    %52 = tpu.matmul %49, %51, %cst_25 {dimension_numbers = #tpu.dot_dimension_numbers<[1], [0], [0], [1], [0, 0, 1, 1], [], []>} : vector<32x33xbf16>, vector<33x33xbf16>, vector<32x33xf32> -> vector<32x33xf32>
    %53 = vector.shape_cast %52 : vector<32x33xf32> to vector<2x1x16x33xf32>
    %54 = vector.extract_strided_slice %34 {offsets = [0, 0, 0, 0], sizes = [2, 1, 16, 33], strides = [1, 1, 1, 1]} : vector<2x2x16x33xf32> to vector<2x1x16x33xf32>
    %55 = vector.shape_cast %54 : vector<2x1x16x33xf32> to vector<2x16x33xf32>
    %56 = vector.extract_strided_slice %5 {offsets = [0, 1, 0, 0], sizes = [2, 1, 1, 1], strides = [1, 1, 1, 1]} : vector<2x4x1x1xf32> to vector<2x1x1x1xf32>
    %57 = vector.shape_cast %56 : vector<2x1x1x1xf32> to vector<2x1x1xf32>
    %58 = vector.broadcast %57 : vector<2x1x1xf32> to vector<2x16x33xf32>
    %59 = arith.mulf %55, %58 : vector<2x16x33xf32>
    %60 = vector.extract_strided_slice %34 {offsets = [0, 1, 0, 0], sizes = [2, 1, 16, 33], strides = [1, 1, 1, 1]} : vector<2x2x16x33xf32> to vector<2x1x16x33xf32>
    %61 = vector.shape_cast %60 : vector<2x1x16x33xf32> to vector<2x16x33xf32>
    %62 = vector.extract_strided_slice %5 {offsets = [0, 3, 0, 0], sizes = [2, 1, 1, 1], strides = [1, 1, 1, 1]} : vector<2x4x1x1xf32> to vector<2x1x1x1xf32>
    %63 = vector.shape_cast %62 : vector<2x1x1x1xf32> to vector<2x1x1xf32>
    %64 = vector.broadcast %63 : vector<2x1x1xf32> to vector<2x16x33xf32>
    %65 = arith.mulf %61, %64 : vector<2x16x33xf32>
    %66 = arith.addf %59, %65 : vector<2x16x33xf32>
    %67 = vector.shape_cast %66 : vector<2x16x33xf32> to vector<32x33xf32>
    %68 = arith.truncf %67 : vector<32x33xf32> to vector<32x33xbf16>
    %69 = vector.extract_strided_slice %6 {offsets = [1, 1, 0, 0], sizes = [1, 1, 33, 33], strides = [1, 1, 1, 1]} : vector<2x2x33x33xbf16> to vector<1x1x33x33xbf16>
    %70 = vector.shape_cast %69 : vector<1x1x33x33xbf16> to vector<33x33xbf16>
    %cst_26 = arith.constant dense<0.000000e+00> : vector<32x33xf32>
    %71 = tpu.matmul %68, %70, %cst_26 {dimension_numbers = #tpu.dot_dimension_numbers<[1], [0], [0], [1], [0, 0, 1, 1], [], []>} : vector<32x33xbf16>, vector<33x33xbf16>, vector<32x33xf32> -> vector<32x33xf32>
    %72 = vector.shape_cast %71 : vector<32x33xf32> to vector<2x1x16x33xf32>
    %73 = tpu.concatenate %53, %72 in 1 : vector<2x1x16x33xf32>, vector<2x1x16x33xf32> -> vector<2x2x16x33xf32>
    %74 = vector.shape_cast %73 : vector<2x2x16x33xf32> to vector<4x16x33xf32>
    %75 = arith.truncf %74 : vector<4x16x33xf32> to vector<4x16x33xbf16>
    %cst_27 = arith.constant dense<0.000000e+00> : vector<4x16x33xf32>
    %76 = tpu.matmul %3, %75, %cst_27 {dimension_numbers = #tpu.dot_dimension_numbers<[2], [1], [1], [2], [0, 0, 0, 1, 1, 2], [0], [0]>} : vector<4x16x16xbf16>, vector<4x16x33xbf16>, vector<4x16x33xf32> -> vector<4x16x33xf32>
    %77 = vector.shape_cast %76 : vector<4x16x33xf32> to vector<2x2x16x33xf32>
    %78 = vector.extract_strided_slice %77 {offsets = [0, 0, 0, 0], sizes = [2, 1, 16, 33], strides = [1, 1, 1, 1]} : vector<2x2x16x33xf32> to vector<2x1x16x33xf32>
    %79 = vector.shape_cast %78 : vector<2x1x16x33xf32> to vector<2x16x33xf32>
    %80 = vector.extract_strided_slice %77 {offsets = [0, 1, 0, 0], sizes = [2, 1, 16, 33], strides = [1, 1, 1, 1]} : vector<2x2x16x33xf32> to vector<2x1x16x33xf32>
    %81 = vector.shape_cast %80 : vector<2x1x16x33xf32> to vector<2x16x33xf32>
    %82 = arith.addf %79, %81 : vector<2x16x33xf32>
    %83 = vector.extract_strided_slice %82 {offsets = [0, 0, 0], sizes = [2, 16, 32], strides = [1, 1, 1]} : vector<2x16x33xf32> to vector<2x16x32xf32>
    %84 = vector.extract_strided_slice %82 {offsets = [0, 0, 32], sizes = [2, 16, 1], strides = [1, 1, 1]} : vector<2x16x33xf32> to vector<2x16x1xf32>
    %85 = arith.mulf %84, %2 : vector<2x16x1xf32>
    %cst_28 = arith.constant 9.99999968E-21 : f32
    %86 = vector.broadcast %cst_28 : f32 to vector<2x16x1xf32>
    %87 = arith.addf %85, %86 : vector<2x16x1xf32>
    %88 = tpu.reciprocal %87 {approx = true} : vector<2x16x1xf32> -> vector<2x16x1xf32>
    %89 = vector.broadcast %2 : vector<2x16x1xf32> to vector<2x16x32xf32>
    %90 = arith.mulf %83, %89 : vector<2x16x32xf32>
    %91 = vector.broadcast %88 : vector<2x16x1xf32> to vector<2x16x32xf32>
    %92 = arith.mulf %90, %91 : vector<2x16x32xf32>
    %c0_29 = arith.constant 0 : index
    %c0_30 = arith.constant 0 : index
    %c0_31 = arith.constant 0 : index
    %93 = vector.load %arg8[%c0_29, %c0_30, %c0_31] : memref<2x16x32xf32, #tpu.memory_space<vmem>>, vector<2x16x32xf32>
    tpu.vector_store %arg8[%c0_29, %c0_30, %c0_31], %92 {strides = array<i32>} : memref<2x16x32xf32, #tpu.memory_space<vmem>>, vector<2x16x32xf32>,
    return
  }
  func.func @transform_0(%arg0: i32) -> (i32, i32, i32) {
    %c0_i32 = arith.constant 0 : i32
    %c0_i32_0 = arith.constant 0 : i32
    %c0_i32_1 = arith.constant 0 : i32
    return %arg0, %c0_i32, %c0_i32_0 : i32, i32, i32
  }
  func.func @transform_1(%arg0: i32) -> (i32, i32, i32) {
    %c0_i32 = arith.constant 0 : i32
    %c0_i32_0 = arith.constant 0 : i32
    %c0_i32_1 = arith.constant 0 : i32
    return %arg0, %c0_i32, %c0_i32_0 : i32, i32, i32
  }
  func.func @transform_2(%arg0: i32) -> (i32, i32, i32) {
    %c0_i32 = arith.constant 0 : i32
    %c0_i32_0 = arith.constant 0 : i32
    %c0_i32_1 = arith.constant 0 : i32
    return %arg0, %c0_i32, %c0_i32_0 : i32, i32, i32
  }
  func.func @transform_3(%arg0: i32) -> (i32, i32, i32) {
    %c0_i32 = arith.constant 0 : i32
    %c0_i32_0 = arith.constant 0 : i32
    %c0_i32_1 = arith.constant 0 : i32
    return %arg0, %c0_i32, %c0_i32_0 : i32, i32, i32
  }
  func.func @transform_4(%arg0: i32) -> (i32, i32, i32, i32) {
    %c0_i32 = arith.constant 0 : i32
    %c0_i32_0 = arith.constant 0 : i32
    %c0_i32_1 = arith.constant 0 : i32
    %c0_i32_2 = arith.constant 0 : i32
    return %arg0, %c0_i32, %c0_i32_0, %c0_i32_1 : i32, i32, i32, i32
  }
  func.func @transform_5(%arg0: i32) -> (i32, i32, i32, i32) {
    %c0_i32 = arith.constant 0 : i32
    %c0_i32_0 = arith.constant 0 : i32
    %c0_i32_1 = arith.constant 0 : i32
    %c0_i32_2 = arith.constant 0 : i32
    return %arg0, %c0_i32, %c0_i32_0, %c0_i32_1 : i32, i32, i32, i32
  }
  func.func @transform_6(%arg0: i32) -> (i32, i32, i32, i32) {
    %c0_i32 = arith.constant 0 : i32
    %c0_i32_0 = arith.constant 0 : i32
    %c0_i32_1 = arith.constant 0 : i32
    %c0_i32_2 = arith.constant 0 : i32
    %c0_i32_3 = arith.constant 0 : i32
    return %c0_i32, %c0_i32_0, %c0_i32_1, %c0_i32_2 : i32, i32, i32, i32
  }
  func.func @transform_7(%arg0: i32) -> (i32, i32, i32) {
    %c0_i32 = arith.constant 0 : i32
    %c0_i32_0 = arith.constant 0 : i32
    %c0_i32_1 = arith.constant 0 : i32
    return %arg0, %c0_i32, %c0_i32_0 : i32, i32, i32
  }
}

</mosaic_0001>

<llo_original>
// kernel: tpu_custom_call.1
$region0: #{tpu_custom_call.1}
  #allocation0 [shape = 'u32[]', space=smem, size = 0x4, offset = 0x4, fixed_abs, tag = 'smem constant byte address 0x4 - core index']
  #allocation1 [shape = 'u32[72,128]{1,0:T(1,128)}', space=vmem, size = 0x9000, scoped, tag = 'internal scratch']
  %s0 = inlined_call_operand.vmem [shape: f32[2,16,32], index: 0, kind: input, shape index: {}]
  %s1 = inlined_call_operand.vmem [shape: bf16[4,16,16], index: 1, kind: input, shape index: {}]
  %s2 = inlined_call_operand.vmem [shape: f32[2,16,1], index: 2, kind: input, shape index: {}]
  %s3 = inlined_call_operand.vmem [shape: f32[2,16,1], index: 3, kind: input, shape index: {}]
  %s4 = inlined_call_operand.vmem [shape: f32[2,2,1,1], index: 4, kind: input, shape index: {}]
  %s5 = inlined_call_operand.vmem [shape: f32[2,4,1,1], index: 5, kind: input, shape index: {}]
  %s6 = inlined_call_operand.vmem [shape: bf16[2,2,33,33], index: 6, kind: input, shape index: {}]
  %s7 = inlined_call_operand.hbm [shape: f32[2,16,32], index: 7, kind: output, shape index: {}]
  %s8 = sld [smem:[#allocation0]]
  $region38: #{tpu_custom_call.1} parent=0
    _
  %s10 = ssub.s32 1, %s8
  %s11 = scalar_select 0, %s10, %s8
  $region1: #{tpu_custom_call.1} parent=0
    #allocation2 [shape = 'u8[16384]{0}', space=vmem, size = 0x4000, scoped, tag = 'output window, operand 0, single buffered']
    #allocation3 [shape = 's32[1]{0}', space=sflag, size = 0x4, scoped, tag = 'scoped memory for tpu_custom_call.1']
    %12 = vsyncpa [#allocation3], 0
    // Predicated region
    $region2: #{tpu_custom_call.1} parent=1 // pred_check
      _
    $region3: #{tpu_custom_call.1} parent=1 // pred_check_branch
      %14 = sbr.rel (0) target = $region5
    $region4: #{tpu_custom_call.1} parent=1 // pred_region
      _
    $region5: #{tpu_custom_call.1} parent=1 // pred_fallthru
      _
    // Predicated region
    $region6: #{tpu_custom_call.1} parent=1 // pred_check
      _
    $region7: #{tpu_custom_call.1} parent=1 // pred_check_branch
      %16 = sbr.rel (0) target = $region9
    $region8: #{tpu_custom_call.1} parent=1 // pred_region
      _
    $region9: #{tpu_custom_call.1} parent=1 // pred_fallthru
      _
    // Predicated region
    $region10: #{tpu_custom_call.1} parent=1 // pred_check
      _
    $region11: #{tpu_custom_call.1} parent=1 // pred_check_branch
      %18 = sbr.rel (0) target = $region13
    $region12: #{tpu_custom_call.1} parent=1 // pred_region
      _
    $region13: #{tpu_custom_call.1} parent=1 // pred_fallthru
      _
    // Predicated region
    $region14: #{tpu_custom_call.1} parent=1 // pred_check
      _
    $region15: #{tpu_custom_call.1} parent=1 // pred_check_branch
      %20 = sbr.rel (0) target = $region17
    $region16: #{tpu_custom_call.1} parent=1 // pred_region
      _
    $region17: #{tpu_custom_call.1} parent=1 // pred_fallthru
      _
    // Predicated region
    $region18: #{tpu_custom_call.1} parent=1 // pred_check
      _
    $region19: #{tpu_custom_call.1} parent=1 // pred_check_branch
      %22 = sbr.rel (0) target = $region21
    $region20: #{tpu_custom_call.1} parent=1 // pred_region
      _
    $region21: #{tpu_custom_call.1} parent=1 // pred_fallthru
      _
    // Predicated region
    $region22: #{tpu_custom_call.1} parent=1 // pred_check
      _
    $region23: #{tpu_custom_call.1} parent=1 // pred_check_branch
      %24 = sbr.rel (0) target = $region25
    $region24: #{tpu_custom_call.1} parent=1 // pred_region
      _
    $region25: #{tpu_custom_call.1} parent=1 // pred_fallthru
      _
    // Predicated region
    $region26: #{tpu_custom_call.1} parent=1 // pred_check
      _
    $region27: #{tpu_custom_call.1} parent=1 // pred_check_branch
      %26 = sbr.rel (0) target = $region29
    $region28: #{tpu_custom_call.1} parent=1 // pred_region
      _
    $region29: #{tpu_custom_call.1} parent=1 // pred_fallthru
      _
    %v28 = vld [vmem:[%s0] sm:$0xff]
    %v29 = vld [vmem:[%s0 + $0x8] sm:$0xff]
    %v30 = vld [vmem:[%s0 + $0x10] sm:$0xff]
    %v31 = vld [vmem:[%s0 + $0x18] sm:$0xff]
    %v32 = vld [vmem:[%s2] sm:$0xff]
    %v33 = vld [vmem:[%s2 + $0x8] sm:$0xff]
    %v34 = vld [vmem:[%s2 + $0x10] sm:$0xff]
    %v35 = vld [vmem:[%s2 + $0x18] sm:$0xff]
    %v36 = vld [vmem:[%s3] sm:$0xff]
    %v37 = vld [vmem:[%s3 + $0x8] sm:$0xff]
    %v38 = vld [vmem:[%s3 + $0x10] sm:$0xff]
    %v39 = vld [vmem:[%s3 + $0x18] sm:$0xff]
    %v40 = vld [vmem:[%s1] sm:$0xf]
    %v41 = vld [vmem:[%s1 + $0x4] sm:$0xf]
    %v42 = vld [vmem:[%s1 + $0x8] sm:$0xf]
    %v43 = vld [vmem:[%s1 + $0xc] sm:$0xf]
    %v44 = vld [vmem:[%s1 + $0x10] sm:$0xf]
    %v45 = vld [vmem:[%s1 + $0x14] sm:$0xf]
    %v46 = vld [vmem:[%s1 + $0x18] sm:$0xf]
    %v47 = vld [vmem:[%s1 + $0x1c] sm:$0xf]
    %v48 = vld [vmem:[%s4] sm:$0x1]
    %v49 = vld [vmem:[%s4 + $0x1] sm:$0x1]
    %v50 = vld [vmem:[%s4 + $0x2] sm:$0x1]
    %v51 = vld [vmem:[%s4 + $0x3] sm:$0x1]
    %v52 = vld [vmem:[%s5] sm:$0x1]
    %v53 = vld [vmem:[%s5 + $0x1] sm:$0x1]
    %v54 = vld [vmem:[%s5 + $0x2] sm:$0x1]
    %v55 = vld [vmem:[%s5 + $0x3] sm:$0x1]
    %v56 = vld [vmem:[%s5 + $0x4] sm:$0x1]
    %v57 = vld [vmem:[%s5 + $0x5] sm:$0x1]
    %v58 = vld [vmem:[%s5 + $0x6] sm:$0x1]
    %v59 = vld [vmem:[%s5 + $0x7] sm:$0x1]
    %v60 = vld [vmem:[%s6] sm:$0xf]
    %v61 = vld [vmem:[%s6 + $0x4] sm:$0xf]
    %v62 = vld [vmem:[%s6 + $0x8] sm:$0xf]
    %v63 = vld [vmem:[%s6 + $0xc] sm:$0xf]
    %v64 = vld [vmem:[%s6 + $0x10] sm:$0x1]
    %v65 = vld [vmem:[%s6 + $0x14] sm:$0xf]
    %v66 = vld [vmem:[%s6 + $0x18] sm:$0xf]
    %v67 = vld [vmem:[%s6 + $0x1c] sm:$0xf]
    %v68 = vld [vmem:[%s6 + $0x20] sm:$0xf]
    %v69 = vld [vmem:[%s6 + $0x24] sm:$0x1]
    %v70 = vld [vmem:[%s6 + $0x28] sm:$0xf]
    %v71 = vld [vmem:[%s6 + $0x2c] sm:$0xf]
    %v72 = vld [vmem:[%s6 + $0x30] sm:$0xf]
    %v73 = vld [vmem:[%s6 + $0x34] sm:$0xf]
    %v74 = vld [vmem:[%s6 + $0x38] sm:$0x1]
    %v75 = vld [vmem:[%s6 + $0x3c] sm:$0xf]
    %v76 = vld [vmem:[%s6 + $0x40] sm:$0xf]
    %v77 = vld [vmem:[%s6 + $0x44] sm:$0xf]
    %v78 = vld [vmem:[%s6 + $0x48] sm:$0xf]
    %v79 = vld [vmem:[%s6 + $0x4c] sm:$0x1]
    %81 = vset.pattern.permute.xlu0 0
    %82 = vperm.xlu0 %81, %v32
    %v83 = vpop.permute.xlu0 %82
    %86 = vset.pattern.permute.xlu0 0
    %87 = vperm.xlu0 %86, %v33
    %v88 = vpop.permute.xlu0 %87
    %91 = vset.pattern.permute.xlu0 0
    %92 = vperm.xlu0 %91, %v34
    %v93 = vpop.permute.xlu0 %92
    %96 = vset.pattern.permute.xlu0 0
    %97 = vperm.xlu0 %96, %v35
    %v98 = vpop.permute.xlu0 %97
    %v100 = vmul.f32 %v28, %v83
    %v101 = vmul.f32 %v29, %v88
    %v102 = vmul.f32 %v30, %v93
    %v103 = vmul.f32 %v31, %v98
    %104 = vrot.lane.b32.xlu0 %v32, 32
    %v105 = vpop.permute.xlu0 %104
    %106 = vrot.lane.b32.xlu0 %v33, 32
    %v107 = vpop.permute.xlu0 %106
    %108 = vrot.lane.b32.xlu0 %v34, 32
    %v109 = vpop.permute.xlu0 %108
    %110 = vrot.lane.b32.xlu0 %v35, 32
    %v111 = vpop.permute.xlu0 %110
    %vm116 = vcmask 261120
    %v117 = vsel %vm116, %v100, %v105
    %v118 = vsel %vm116, %v101, %v107
    %v119 = vsel %vm116, %v102, %v109
    %v120 = vsel %vm116, %v103, %v111
    %v123 = vperm.slane %v48, 0
    %v124 = vperm.slane %v50, 0
    %125 = vset.pattern.permute.xlu0 0
    %126 = vperm.xlu0 %125, %v123
    %v127 = vpop.permute.xlu0 %126
    %129 = vset.pattern.permute.xlu0 0
    %130 = vperm.xlu0 %129, %v124
    %v131 = vpop.permute.xlu0 %130
    %v133 = vmul.f32 %v117, %v127
    %v134 = vmul.f32 %v118, %v127
    %v135 = vmul.f32 %v119, %v131
    %v136 = vmul.f32 %v120, %v131
    %v137 = vpack.c.bf16 %v134, %v133
    %v138 = vpack.c.bf16 %v136, %v135
    %v144 = vunpack.c.l.b16 %v60
    %v145 = vunpack.c.l.b16 %v61
    %v146 = vunpack.c.l.b16 %v62
    %v147 = vunpack.c.l.b16 %v63
    %v148 = vunpack.c.l.b16 %v64
    %v149 = vpack.c.b16 %v145, %v144
    %v150 = vpack.c.b16 %v147, %v146
    %v151 = vpack.c.b16 %v148, %v148
    %vm154 = vcmask 269312
    %v156 = vsel %vm154, %v137, 0
    %v159 = vsel %vm154, %v138, 0
    %vm161 = vcmask 1040384
    %v162 = vsel 0, 4294967295, 65535
    %v163 = vsel %vm161, %v162, 0
    %v165 = vand.u32 %v151, %v163
    %167 = vmatpush.bf16.msra.mxu0 0
    %168 = vmatpush.bf16.msra.mxu0 0
    %169 = vmatpush.bf16.msra.mxu0 0
    %170 = vmatpush.bf16.msra.mxu0 0
    %171 = vmatpush.bf16.msra.mxu0 0
    %172 = vmatpush.bf16.msra.mxu0 %v165
    %173 = vmatpush.bf16.msra.mxu0 %v150
    %174 = vmatpush.bf16.msra.mxu0 %v149
    %175 = vmatmul.bf16.gmra.mxu0 %v156
    %v176 = vpop.f32.mrf.mxu0
    %v177 = vadd.f32 0.0, %v176
    %v178 = vpop.f32.mrf.mxu0
    %v179 = vadd.f32 0.0, %v178
    %180 = vmatmul.bf16.gmra.mxu0 %v159
    %v181 = vpop.f32.mrf.mxu0
    %v182 = vadd.f32 0.0, %v181
    %v183 = vpop.f32.mrf.mxu0
    %v184 = vadd.f32 0.0, %v183
    %185 = vdwg.mxu0
    %v188 = vperm.slane %v49, 0
    %v189 = vperm.slane %v51, 0
    %190 = vset.pattern.permute.xlu0 0
    %191 = vperm.xlu0 %190, %v188
    %v192 = vpop.permute.xlu0 %191
    %194 = vset.pattern.permute.xlu0 0
    %195 = vperm.xlu0 %194, %v189
    %v196 = vpop.permute.xlu0 %195
    %v198 = vmul.f32 %v117, %v192
    %v199 = vmul.f32 %v118, %v192
    %v200 = vmul.f32 %v119, %v196
    %v201 = vmul.f32 %v120, %v196
    %v202 = vpack.c.bf16 %v199, %v198
    %v203 = vpack.c.bf16 %v201, %v200
    %v209 = vunpack.c.l.b16 %v65
    %v210 = vunpack.c.l.b16 %v66
    %v211 = vunpack.c.l.b16 %v67
    %v212 = vunpack.c.l.b16 %v68
    %v213 = vunpack.c.l.b16 %v69
    %v214 = vpack.c.b16 %v210, %v209
    %v215 = vpack.c.b16 %v212, %v211
    %v216 = vpack.c.b16 %v213, %v213
    %v220 = vsel %vm154, %v202, 0
    %v223 = vsel %vm154, %v203, 0
    %v226 = vand.u32 %v216, %v163
    %228 = vmatpush.bf16.msra.mxu0 0
    %229 = vmatpush.bf16.msra.mxu0 0
    %230 = vmatpush.bf16.msra.mxu0 0
    %231 = vmatpush.bf16.msra.mxu0 0
    %232 = vmatpush.bf16.msra.mxu0 0
    %233 = vmatpush.bf16.msra.mxu0 %v226
    %234 = vmatpush.bf16.msra.mxu0 %v215
    %235 = vmatpush.bf16.msra.mxu0 %v214
    %236 = vmatmul.bf16.gmra.mxu0 %v220
    %v237 = vpop.f32.mrf.mxu0
    %v238 = vadd.f32 0.0, %v237
    %v239 = vpop.f32.mrf.mxu0
    %v240 = vadd.f32 0.0, %v239
    %241 = vmatmul.bf16.gmra.mxu0 %v223
    %v242 = vpop.f32.mrf.mxu0
    %v243 = vadd.f32 0.0, %v242
    %v244 = vpop.f32.mrf.mxu0
    %v245 = vadd.f32 0.0, %v244
    %246 = vdwg.mxu0
    %v247 = vpack.c.bf16 %v177, %v177
    %v248 = vpack.c.bf16 %v179, %v179
    %v249 = vpack.c.bf16 %v238, %v238
    %v250 = vpack.c.bf16 %v240, %v240
    %v251 = vpack.c.bf16 %v182, %v182
    %v252 = vpack.c.bf16 %v184, %v184
    %v253 = vpack.c.bf16 %v243, %v243
    %v254 = vpack.c.bf16 %v245, %v245
    %v257 = vunpack.c.l.b16 %v40
    %v258 = vunpack.c.l.b16 %v41
    %v259 = vpack.c.b16 %v258, %v257
    %v262 = vunpack.c.l.b16 %v247
    %v263 = vunpack.c.l.b16 %v248
    %v264 = vpack.c.b16 %v263, %v262
    %vm266 = vcmask 130048
    %v268 = vsel %vm266, %v259, 0
    %270 = vmatpush.bf16.msra.mxu0 0
    %271 = vmatpush.bf16.msra.mxu0 0
    %272 = vmatpush.bf16.msra.mxu0 0
    %273 = vmatpush.bf16.msra.mxu0 0
    %274 = vmatpush.bf16.msra.mxu0 0
    %275 = vmatpush.bf16.msra.mxu0 0
    %276 = vmatpush.bf16.msra.mxu0 0
    %277 = vmatpush.bf16.msra.mxu0 %v264
    %278 = vmatmul.bf16.gmra.mxu0 %v268
    %v279 = vpop.f32.mrf.mxu0
    %v280 = vadd.f32 0.0, %v279
    %v281 = vpop.f32.mrf.mxu0
    %v282 = vadd.f32 0.0, %v281
    %283 = vdwg.mxu0
    %v286 = vunpack.c.l.b16 %v42
    %v287 = vunpack.c.l.b16 %v43
    %v288 = vpack.c.b16 %v287, %v286
    %v291 = vunpack.c.l.b16 %v249
    %v292 = vunpack.c.l.b16 %v250
    %v293 = vpack.c.b16 %v292, %v291
    %v296 = vsel %vm266, %v288, 0
    %298 = vmatpush.bf16.msra.mxu0 0
    %299 = vmatpush.bf16.msra.mxu0 0
    %300 = vmatpush.bf16.msra.mxu0 0
    %301 = vmatpush.bf16.msra.mxu0 0
    %302 = vmatpush.bf16.msra.mxu0 0
    %303 = vmatpush.bf16.msra.mxu0 0
    %304 = vmatpush.bf16.msra.mxu0 0
    %305 = vmatpush.bf16.msra.mxu0 %v293
    %306 = vmatmul.bf16.gmra.mxu0 %v296
    %v307 = vpop.f32.mrf.mxu0
    %v308 = vadd.f32 0.0, %v307
    %v309 = vpop.f32.mrf.mxu0
    %v310 = vadd.f32 0.0, %v309
    %311 = vdwg.mxu0
    %v314 = vunpack.c.l.b16 %v44
    %v315 = vunpack.c.l.b16 %v45
    %v316 = vpack.c.b16 %v315, %v314
    %v319 = vunpack.c.l.b16 %v251
    %v320 = vunpack.c.l.b16 %v252
    %v321 = vpack.c.b16 %v320, %v319
    %v324 = vsel %vm266, %v316, 0
    %326 = vmatpush.bf16.msra.mxu0 0
    %327 = vmatpush.bf16.msra.mxu0 0
    %328 = vmatpush.bf16.msra.mxu0 0
    %329 = vmatpush.bf16.msra.mxu0 0
    %330 = vmatpush.bf16.msra.mxu0 0
    %331 = vmatpush.bf16.msra.mxu0 0
    %332 = vmatpush.bf16.msra.mxu0 0
    %333 = vmatpush.bf16.msra.mxu0 %v321
    %334 = vmatmul.bf16.gmra.mxu0 %v324
    %v335 = vpop.f32.mrf.mxu0
    %v336 = vadd.f32 0.0, %v335
    %v337 = vpop.f32.mrf.mxu0
    %v338 = vadd.f32 0.0, %v337
    %339 = vdwg.mxu0
    %v342 = vunpack.c.l.b16 %v46
    %v343 = vunpack.c.l.b16 %v47
    %v344 = vpack.c.b16 %v343, %v342
    %v347 = vunpack.c.l.b16 %v253
    %v348 = vunpack.c.l.b16 %v254
    %v349 = vpack.c.b16 %v348, %v347
    %v352 = vsel %vm266, %v344, 0
    %354 = vmatpush.bf16.msra.mxu0 0
    %355 = vmatpush.bf16.msra.mxu0 0
    %356 = vmatpush.bf16.msra.mxu0 0
    %357 = vmatpush.bf16.msra.mxu0 0
    %358 = vmatpush.bf16.msra.mxu0 0
    %359 = vmatpush.bf16.msra.mxu0 0
    %360 = vmatpush.bf16.msra.mxu0 0
    %361 = vmatpush.bf16.msra.mxu0 %v349
    %362 = vmatmul.bf16.gmra.mxu0 %v352
    %v363 = vpop.f32.mrf.mxu0
    %v364 = vadd.f32 0.0, %v363
    %v365 = vpop.f32.mrf.mxu0
    %v366 = vadd.f32 0.0, %v365
    %367 = vdwg.mxu0
    %v370 = vperm.slane %v52, 0
    %v371 = vperm.slane %v56, 0
    %372 = vset.pattern.permute.xlu0 0
    %373 = vperm.xlu0 %372, %v370
    %v374 = vpop.permute.xlu0 %373
    %376 = vset.pattern.permute.xlu0 0
    %377 = vperm.xlu0 %376, %v371
    %v378 = vpop.permute.xlu0 %377
    %v380 = vmul.f32 %v280, %v374
    %v381 = vmul.f32 %v282, %v374
    %v382 = vmul.f32 %v336, %v378
    %v383 = vmul.f32 %v338, %v378
    %v386 = vperm.slane %v54, 0
    %v387 = vperm.slane %v58, 0
    %388 = vset.pattern.permute.xlu0 0
    %389 = vperm.xlu0 %388, %v386
    %v390 = vpop.permute.xlu0 %389
    %392 = vset.pattern.permute.xlu0 0
    %393 = vperm.xlu0 %392, %v387
    %v394 = vpop.permute.xlu0 %393
    %v396 = vmul.f32 %v308, %v390
    %v397 = vmul.f32 %v310, %v390
    %v398 = vmul.f32 %v364, %v394
    %v399 = vmul.f32 %v366, %v394
    %v400 = vadd.f32 %v380, %v396
    %v401 = vadd.f32 %v381, %v397
    %v402 = vadd.f32 %v382, %v398
    %v403 = vadd.f32 %v383, %v399
    %v404 = vpack.c.bf16 %v401, %v400
    %v405 = vpack.c.bf16 %v403, %v402
    %v411 = vunpack.c.l.b16 %v70
    %v412 = vunpack.c.l.b16 %v71
    %v413 = vunpack.c.l.b16 %v72
    %v414 = vunpack.c.l.b16 %v73
    %v415 = vunpack.c.l.b16 %v74
    %v416 = vpack.c.b16 %v412, %v411
    %v417 = vpack.c.b16 %v414, %v413
    %v418 = vpack.c.b16 %v415, %v415
    %v422 = vsel %vm154, %v404, 0
    %v425 = vsel %vm154, %v405, 0
    %v428 = vand.u32 %v418, %v163
    %430 = vmatpush.bf16.msra.mxu0 0
    %431 = vmatpush.bf16.msra.mxu0 0
    %432 = vmatpush.bf16.msra.mxu0 0
    %433 = vmatpush.bf16.msra.mxu0 0
    %434 = vmatpush.bf16.msra.mxu0 0
    %435 = vmatpush.bf16.msra.mxu0 %v428
    %436 = vmatpush.bf16.msra.mxu0 %v417
    %437 = vmatpush.bf16.msra.mxu0 %v416
    %438 = vmatmul.bf16.gmra.mxu0 %v422
    %v439 = vpop.f32.mrf.mxu0
    %v440 = vadd.f32 0.0, %v439
    %v441 = vpop.f32.mrf.mxu0
    %v442 = vadd.f32 0.0, %v441
    %443 = vmatmul.bf16.gmra.mxu0 %v425
    %v444 = vpop.f32.mrf.mxu0
    %v445 = vadd.f32 0.0, %v444
    %v446 = vpop.f32.mrf.mxu0
    %v447 = vadd.f32 0.0, %v446
    %448 = vdwg.mxu0
    %v451 = vperm.slane %v53, 0
    %v452 = vperm.slane %v57, 0
    %453 = vset.pattern.permute.xlu0 0
    %454 = vperm.xlu0 %453, %v451
    %v455 = vpop.permute.xlu0 %454
    %457 = vset.pattern.permute.xlu0 0
    %458 = vperm.xlu0 %457, %v452
    %v459 = vpop.permute.xlu0 %458
    %v461 = vmul.f32 %v280, %v455
    %v462 = vmul.f32 %v282, %v455
    %v463 = vmul.f32 %v336, %v459
    %v464 = vmul.f32 %v338, %v459
    %v467 = vperm.slane %v55, 0
    %v468 = vperm.slane %v59, 0
    %469 = vset.pattern.permute.xlu0 0
    %470 = vperm.xlu0 %469, %v467
    %v471 = vpop.permute.xlu0 %470
    %473 = vset.pattern.permute.xlu0 0
    %474 = vperm.xlu0 %473, %v468
    %v475 = vpop.permute.xlu0 %474
    %v477 = vmul.f32 %v308, %v471
    %v478 = vmul.f32 %v310, %v471
    %v479 = vmul.f32 %v364, %v475
    %v480 = vmul.f32 %v366, %v475
    %v481 = vadd.f32 %v461, %v477
    %v482 = vadd.f32 %v462, %v478
    %v483 = vadd.f32 %v463, %v479
    %v484 = vadd.f32 %v464, %v480
    %v485 = vpack.c.bf16 %v482, %v481
    %v486 = vpack.c.bf16 %v484, %v483
    %v492 = vunpack.c.l.b16 %v75
    %v493 = vunpack.c.l.b16 %v76
    %v494 = vunpack.c.l.b16 %v77
    %v495 = vunpack.c.l.b16 %v78
    %v496 = vunpack.c.l.b16 %v79
    %v497 = vpack.c.b16 %v493, %v492
    %v498 = vpack.c.b16 %v495, %v494
    %v499 = vpack.c.b16 %v496, %v496
    %v503 = vsel %vm154, %v485, 0
    %v506 = vsel %vm154, %v486, 0
    %v509 = vand.u32 %v499, %v163
    %511 = vmatpush.bf16.msra.mxu0 0
    %512 = vmatpush.bf16.msra.mxu0 0
    %513 = vmatpush.bf16.msra.mxu0 0
    %514 = vmatpush.bf16.msra.mxu0 0
    %515 = vmatpush.bf16.msra.mxu0 0
    %516 = vmatpush.bf16.msra.mxu0 %v509
    %517 = vmatpush.bf16.msra.mxu0 %v498
    %518 = vmatpush.bf16.msra.mxu0 %v497
    %519 = vmatmul.bf16.gmra.mxu0 %v503
    %v520 = vpop.f32.mrf.mxu0
    %v521 = vadd.f32 0.0, %v520
    %v522 = vpop.f32.mrf.mxu0
    %v523 = vadd.f32 0.0, %v522
    %524 = vmatmul.bf16.gmra.mxu0 %v506
    %v525 = vpop.f32.mrf.mxu0
    %v526 = vadd.f32 0.0, %v525
    %v527 = vpop.f32.mrf.mxu0
    %v528 = vadd.f32 0.0, %v527
    %529 = vdwg.mxu0
    %v530 = vpack.c.bf16 %v440, %v440
    %v531 = vpack.c.bf16 %v442, %v442
    %v532 = vpack.c.bf16 %v521, %v521
    %v533 = vpack.c.bf16 %v523, %v523
    %v534 = vpack.c.bf16 %v445, %v445
    %v535 = vpack.c.bf16 %v447, %v447
    %v536 = vpack.c.bf16 %v526, %v526
    %v537 = vpack.c.bf16 %v528, %v528
    %v540 = vunpack.c.l.b16 %v530
    %v541 = vunpack.c.l.b16 %v531
    %v542 = vpack.c.b16 %v541, %v540
    %544 = vmatpush.bf16.msra.mxu0 0
    %545 = vmatpush.bf16.msra.mxu0 0
    %546 = vmatpush.bf16.msra.mxu0 0
    %547 = vmatpush.bf16.msra.mxu0 0
    %548 = vmatpush.bf16.msra.mxu0 0
    %549 = vmatpush.bf16.msra.mxu0 0
    %550 = vmatpush.bf16.msra.mxu0 0
    %551 = vmatpush.bf16.msra.mxu0 %v542
    %552 = vmatmul.bf16.gmra.mxu0 %v268
    %v553 = vpop.f32.mrf.mxu0
    %v554 = vadd.f32 0.0, %v553
    %v555 = vpop.f32.mrf.mxu0
    %v556 = vadd.f32 0.0, %v555
    %557 = vdwg.mxu0
    %v560 = vunpack.c.l.b16 %v532
    %v561 = vunpack.c.l.b16 %v533
    %v562 = vpack.c.b16 %v561, %v560
    %564 = vmatpush.bf16.msra.mxu0 0
    %565 = vmatpush.bf16.msra.mxu0 0
    %566 = vmatpush.bf16.msra.mxu0 0
    %567 = vmatpush.bf16.msra.mxu0 0
    %568 = vmatpush.bf16.msra.mxu0 0
    %569 = vmatpush.bf16.msra.mxu0 0
    %570 = vmatpush.bf16.msra.mxu0 0
    %571 = vmatpush.bf16.msra.mxu0 %v562
    %572 = vmatmul.bf16.gmra.mxu0 %v296
    %v573 = vpop.f32.mrf.mxu0
    %v574 = vadd.f32 0.0, %v573
    %v575 = vpop.f32.mrf.mxu0
    %v576 = vadd.f32 0.0, %v575
    %577 = vdwg.mxu0
    %v580 = vunpack.c.l.b16 %v534
    %v581 = vunpack.c.l.b16 %v535
    %v582 = vpack.c.b16 %v581, %v580
    %584 = vmatpush.bf16.msra.mxu0 0
    %585 = vmatpush.bf16.msra.mxu0 0
    %586 = vmatpush.bf16.msra.mxu0 0
    %587 = vmatpush.bf16.msra.mxu0 0
    %588 = vmatpush.bf16.msra.mxu0 0
    %589 = vmatpush.bf16.msra.mxu0 0
    %590 = vmatpush.bf16.msra.mxu0 0
    %591 = vmatpush.bf16.msra.mxu0 %v582
    %592 = vmatmul.bf16.gmra.mxu0 %v324
    %v593 = vpop.f32.mrf.mxu0
    %v594 = vadd.f32 0.0, %v593
    %v595 = vpop.f32.mrf.mxu0
    %v596 = vadd.f32 0.0, %v595
    %597 = vdwg.mxu0
    %v600 = vunpack.c.l.b16 %v536
    %v601 = vunpack.c.l.b16 %v537
    %v602 = vpack.c.b16 %v601, %v600
    %604 = vmatpush.bf16.msra.mxu0 0
    %605 = vmatpush.bf16.msra.mxu0 0
    %606 = vmatpush.bf16.msra.mxu0 0
    %607 = vmatpush.bf16.msra.mxu0 0
    %608 = vmatpush.bf16.msra.mxu0 0
    %609 = vmatpush.bf16.msra.mxu0 0
    %610 = vmatpush.bf16.msra.mxu0 0
    %611 = vmatpush.bf16.msra.mxu0 %v602
    %612 = vmatmul.bf16.gmra.mxu0 %v352
    %v613 = vpop.f32.mrf.mxu0
    %v614 = vadd.f32 0.0, %v613
    %v615 = vpop.f32.mrf.mxu0
    %v616 = vadd.f32 0.0, %v615
    %617 = vdwg.mxu0
    %v618 = vadd.f32 %v554, %v574
    %v619 = vadd.f32 %v556, %v576
    %v620 = vadd.f32 %v594, %v614
    %v621 = vadd.f32 %v596, %v616
    %626 = vrot.lane.b32.xlu0 %v36, 32
    %v627 = vpop.permute.xlu0 %626
    %628 = vrot.lane.b32.xlu0 %v37, 32
    %v629 = vpop.permute.xlu0 %628
    %630 = vrot.lane.b32.xlu0 %v38, 32
    %v631 = vpop.permute.xlu0 %630
    %632 = vrot.lane.b32.xlu0 %v39, 32
    %v633 = vpop.permute.xlu0 %632
    %v638 = vmul.f32 %v618, %v627
    %v639 = vmul.f32 %v619, %v629
    %v640 = vmul.f32 %v620, %v631
    %v641 = vmul.f32 %v621, %v633
    %v642 = vadd.f32 %v638, 1e-20
    %v643 = vadd.f32 %v639, 1e-20
    %v644 = vadd.f32 %v640, 1e-20
    %v645 = vadd.f32 %v641, 1e-20
    %v646 = vrcp.pop %v642
    %v647 = vrcp.pop %v643
    %v648 = vrcp.pop %v644
    %v649 = vrcp.pop %v645
    %650 = vset.pattern.permute.xlu0 0
    %651 = vperm.xlu0 %650, %v36
    %v652 = vpop.permute.xlu0 %651
    %654 = vset.pattern.permute.xlu0 0
    %655 = vperm.xlu0 %654, %v37
    %v656 = vpop.permute.xlu0 %655
    %658 = vset.pattern.permute.xlu0 0
    %659 = vperm.xlu0 %658, %v38
    %v660 = vpop.permute.xlu0 %659
    %662 = vset.pattern.permute.xlu0 0
    %663 = vperm.xlu0 %662, %v39
    %v664 = vpop.permute.xlu0 %663
    %v666 = vmul.f32 %v618, %v652
    %v667 = vmul.f32 %v619, %v656
    %v668 = vmul.f32 %v620, %v660
    %v669 = vmul.f32 %v621, %v664
    %671 = vset.pattern.permute.xlu0 32
    %672 = vperm.xlu0 %671, %v646
    %v673 = vpop.permute.xlu0 %672
    %676 = vset.pattern.permute.xlu0 32
    %677 = vperm.xlu0 %676, %v647
    %v678 = vpop.permute.xlu0 %677
    %681 = vset.pattern.permute.xlu0 32
    %682 = vperm.xlu0 %681, %v648
    %v683 = vpop.permute.xlu0 %682
    %686 = vset.pattern.permute.xlu0 32
    %687 = vperm.xlu0 %686, %v649
    %v688 = vpop.permute.xlu0 %687
    %v690 = vmul.f32 %v666, %v673
    %v691 = vmul.f32 %v667, %v678
    %v692 = vmul.f32 %v668, %v683
    %v693 = vmul.f32 %v669, %v688
    %694 = vst.msk [vmem:[#allocation2] sm:$0xff] %vm116, %v690
    %695 = vst.msk [vmem:[#allocation2 + $0x8] sm:$0xff] %vm116, %v691
    %696 = vst.msk [vmem:[#allocation2 + $0x10] sm:$0xff] %vm116, %v692
    %697 = vst.msk [vmem:[#allocation2 + $0x18] sm:$0xff] %vm116, %v693
    // Predicated region
    $region30: #{tpu_custom_call.1} parent=1 // pred_check
      _
    $region31: #{tpu_custom_call.1} parent=1 // pred_check_branch
      %699 = sbr.rel (0) target = $region33
    $region32: #{tpu_custom_call.1} parent=1 // pred_region
      %701 = vsyncadd [#allocation3], 0
      %s702 = sshll.u32 [#allocation2], 4
      %s703 = int_to_ptr.vmem [resolvable:$true] %s702
      %s704 = sshll.u32 %s7, 4
      %s705 = int_to_ptr.hbm [resolvable:$true] %s704
      %710 = dma.vmem_to_hbm [thread:$0]  %s703, 512, %s705, [#allocation3], 128, 128, 8
    $region33: #{tpu_custom_call.1} parent=1 // pred_fallthru
      _
    // Predicated region
    $region34: #{tpu_custom_call.1} parent=1 // pred_check
      _
    $region35: #{tpu_custom_call.1} parent=1 // pred_check_branch
      %712 = sbr.rel (0) target = $region37
    $region36: #{tpu_custom_call.1} parent=1 // pred_region
      %714 = dma.done [#allocation3], 512
    $region37: #{tpu_custom_call.1} parent=1 // pred_fallthru
      _
    %715 = vsyncpa [#allocation3], 1

</llo_original>
